<compile_context>
chip_gen: v7x
topology: tpu7x:2x2x1
jax: 0.10.0
libtpu: 0.0.40
codegen_flags: <defaults>
</compile_context>

<pallas_src>
import jax
import jax.numpy as jnp
from jax import lax
from jax.experimental import pallas as pl
from jax.experimental.pallas import tpu as pltpu


# -----------------------------------------------------------------------------
# Pallas kernel: LSTM recurrence (statically unrolled) + fc head.
# -----------------------------------------------------------------------------
def _make_lstm_kernel(T, H, O, BP):
    def kernel(act_ref, w_ref, out_ref):
        # weights slab layout:
        #   rows [0:H)      : W_hh^T (g-gate columns pre-scaled by 2)
        #   rows [H:H+O)    : W_fc   (first H lanes)
        #   row   H+O       : b_fc   (first O lanes)
        whh = w_ref[0:H, :]                                  # (H, 4H)

        # activation slab row-block 0 = packed initial state [h0 | c0 | 0]
        h = act_ref[0:BP, 0:H]                               # (BP, H)
        c = act_ref[0:BP, H:2 * H]                           # (BP, H)

        # ---- recurrence, statically unrolled ---------------------------------
        # Per-step input contribution (embedding gather + input projection +
        # combined bias) was hoisted out of the kernel; it arrives as one
        # aligned (BP, 4H) tile per step.  A single full-width sigmoid gives
        # all four gate activations (tanh(x) = 2*sigmoid(2x) - 1).
        for t in range(T):
            gx = act_ref[(t + 1) * BP:(t + 2) * BP, :]       # whole-tile read
            gates = gx + jnp.dot(h, whh, preferred_element_type=jnp.float32)
            s = jax.nn.sigmoid(gates)                        # one EUP pass
            i_g = s[:, 0:H]
            f_g = s[:, H:2 * H]
            g_g = 2.0 * s[:, 2 * H:3 * H] - 1.0              # == tanh
            o_g = s[:, 3 * H:4 * H]
            c = f_g * c + i_g * g_g
            h = o_g * jnp.tanh(c)

        # ---- fc head on the last hidden state --------------------------------
        wfc = w_ref[H:H + O, 0:H]                            # (O, H)
        bfc = w_ref[H + O:H + O + 1, 0:O]                    # (1, O)
        if O == 1:
            # (B,H)@(H,1) would pay a full MXU fill/drain for one column:
            # VPU multiply + lane reduction instead.
            fc = jnp.sum(h * wfc, axis=-1, keepdims=True) + bfc
        else:
            fc = lax.dot_general(h, wfc, (((1,), (1,)), ((), ())),
                                 preferred_element_type=jnp.float32) + bfc

        # ---- single lane-dense packed output: [h_n | c_n | fc | 0] -----------
        parts = [h, c, fc]
        pad_w = 4 * H - (2 * H + O)
        if pad_w > 0:
            parts.append(jnp.zeros((BP, pad_w), jnp.float32))
        out_ref[...] = jnp.concatenate(parts, axis=1)

    return kernel


def _lstm_fused_pallas(act_slab, w_slab, *, T, H, O, BP):
    vmem = pl.BlockSpec(memory_space=pltpu.MemorySpace.VMEM)
    return pl.pallas_call(
        _make_lstm_kernel(T, H, O, BP),
        out_shape=jax.ShapeDtypeStruct((BP, 4 * H), jnp.float32),
        in_specs=[vmem, vmem],
        out_specs=vmem,
    )(act_slab, w_slab)


# -----------------------------------------------------------------------------
# LSTM1 module equivalent
# -----------------------------------------------------------------------------
class LSTM1Pallas:
    def __init__(self, input_size, batch_size, hidden_size, num_embedding=28,
                 embedding_size=5, output_size=1, num_layer=1, key=None):
        assert num_layer == 1, "single-layer LSTM (as used by the module)"
        # TODO(synk): nn.LSTM's dropout arg is a no-op for num_layers=1, so it
        # is intentionally not modelled.
        self.batch_size = batch_size
        self.n_layer = num_layer
        self.hidden_size = hidden_size
        self.input_size = input_size
        self.embedding_size = embedding_size
        self.num_embedding = num_embedding
        self.output_size = output_size

        if key is None:
            key = jax.random.PRNGKey(42)
        ks = jax.random.split(key, 7)
        H, E = hidden_size, embedding_size
        D_in = E + 1
        k = 1.0 / jnp.sqrt(H)

        # nn.Embedding(num_embedding, embedding_size): N(0, 1)
        self.emb = jax.random.normal(ks[0], (num_embedding, E), jnp.float32)
        # nn.LSTM weights (uniform(-1/sqrt(H), 1/sqrt(H))), gate order i,f,g,o
        self.w_ih = jax.random.uniform(ks[1], (4 * H, D_in), jnp.float32, -k, k)
        self.w_hh = jax.random.uniform(ks[2], (4 * H, H), jnp.float32, -k, k)
        self.b_ih = jax.random.uniform(ks[3], (4 * H,), jnp.float32, -k, k)
        self.b_hh = jax.random.uniform(ks[4], (4 * H,), jnp.float32, -k, k)
        # nn.Linear(H, output_size)
        self.w_fc = jax.random.uniform(ks[5], (output_size, H), jnp.float32, -k, k)
        self.b_fc = jax.random.uniform(ks[6], (output_size,), jnp.float32, -k, k)

        self._prepare_fused_weights()

    def _prepare_fused_weights(self):
        """Offline weight prep for the fused kernel (done once at init)."""
        H, E, O = self.hidden_size, self.embedding_size, self.output_size
        # Pre-scale the g-gate block by 2 so tanh(x) = 2*sigmoid(2x) - 1 turns
        # all four gate activations into a single full-width sigmoid.
        scale = jnp.concatenate([jnp.ones(2 * H, jnp.float32),
                                 2.0 * jnp.ones(H, jnp.float32),
                                 jnp.ones(H, jnp.float32)])              # (4H,)
        # Per-token gate table: embedding lookup + emb-part of the input
        # projection collapsed into one (num_embedding, 4H) table.
        self.gate_table = (self.emb @ self.w_ih[:, :E].T) * scale[None, :]
        self.w_val = self.w_ih[:, E] * scale                             # (4H,)
        self.bias = (self.b_ih + self.b_hh) * scale                      # (4H,)

        # One packed lane-dense weights slab for the kernel:
        #   rows [0:H)   : W_hh^T (scaled)
        #   rows [H:H+O) : W_fc   (first H lanes)
        #   row   H+O    : b_fc   (first O lanes)
        rows = H + O + 1
        rows_pad = -(-rows // 8) * 8
        slab = jnp.zeros((rows_pad, 4 * H), jnp.float32)
        slab = slab.at[:H, :].set(self.w_hh.T * scale[None, :])
        slab = slab.at[H:H + O, :H].set(self.w_fc)
        slab = slab.at[H + O, :O].set(self.b_fc)
        self.w_slab = slab

    def init_hidden(self, batch_size):
        z = jnp.zeros((self.n_layer, batch_size, self.hidden_size), jnp.float32)
        return (z, z)

    def __call__(self, x, hidden):
        # x: (B, T, 2) float32 ; hidden = (h0, c0) each (1, B, H)
        B, T, _ = x.shape
        assert B == self.batch_size and T == self.input_size
        H, O = self.hidden_size, self.output_size
        h0, c0 = hidden
        BP = max(8, -(-B // 8) * 8)      # batch padded to 8 sublanes

        # Host-side glue (trivial XLA ops, fused under jit): embedding gather
        # against the precomputed gate table, scalar feature column, combined
        # bias, time-major layout, and packing into one lane-dense slab.
        idx = x[:, :, 0].astype(jnp.int32)                       # (B, T)
        val = x[:, :, 1]                                         # (B, T)
        gx = jnp.take(self.gate_table, idx, axis=0)              # (B, T, 4H)
        gx = gx + val[..., None] * self.w_val + self.bias
        gx = jnp.transpose(gx, (1, 0, 2))                        # (T, B, 4H)
        gx = jnp.pad(gx, ((0, 0), (0, BP - B), (0, 0)))          # (T, BP, 4H)

        state = jnp.concatenate([h0[0], c0[0]], axis=1)          # (B, 2H)
        state = jnp.pad(state, ((0, BP - B), (0, 2 * H)))        # (BP, 4H)

        act_slab = jnp.concatenate([state[None], gx],
                                   axis=0).reshape((T + 1) * BP, 4 * H)

        packed = _lstm_fused_pallas(act_slab, self.w_slab,
                                    T=T, H=H, O=O, BP=BP)        # (BP, 4H)
        h_n = packed[:B, 0:H]
        c_n = packed[:B, H:2 * H]
        out = packed[:B, 2 * H:2 * H + O]
        return out, (h_n[None], c_n[None])

    # pure-JAX reference (unmodified weights) for a correctness check
    def reference(self, x, hidden):
        B, T, _ = x.shape
        h0, c0 = hidden
        tt1 = x[:, :, 1][:, :, None]
        tt2 = self.emb[x[:, :, 0].astype(jnp.int32)]
        inp = jnp.concatenate([tt2, tt1], axis=2)
        H = self.hidden_size

        def step(carry, x_t):
            h, c = carry
            g = x_t @ self.w_ih.T + h @ self.w_hh.T + self.b_ih + self.b_hh
            i = jax.nn.sigmoid(g[:, :H])
            f = jax.nn.sigmoid(g[:, H:2 * H])
            gg = jnp.tanh(g[:, 2 * H:3 * H])
            o = jax.nn.sigmoid(g[:, 3 * H:])
            c = f * c + i * gg
            h = o * jnp.tanh(c)
            return (h, c), h

        (h, c), _ = lax.scan(step, (h0[0], c0[0]), jnp.transpose(inp, (1, 0, 2)))
        out = h @ self.w_fc.T + self.b_fc
        return out, (h[None], c[None])


if __name__ == "__main__":
    batch = 2
    seq = 8          # == input_size in the module
    hidden = 32
    num_embedding = 28

    model = LSTM1Pallas(input_size=seq, batch_size=batch, hidden_size=hidden,
                        num_embedding=num_embedding, embedding_size=5,
                        output_size=1, num_layer=1,
                        key=jax.random.PRNGKey(42))

    key = jax.random.PRNGKey(0)
    k_idx, k_val = jax.random.split(key)
    idx = jax.random.randint(k_idx, (batch, seq), 0, num_embedding).astype(jnp.float32)
    val = jax.random.normal(k_val, (batch, seq), jnp.float32)
    x = jnp.stack([idx, val], axis=2)            # (B, T, 2)

    hidden0 = model.init_hidden(batch)

    # jit the whole forward so the tiny host-side glue + pallas_call compile
    # into a single executable (one dispatch).
    fwd = jax.jit(model.__call__)
    out, (h_n, c_n) = fwd(x, hidden0)
    jax.block_until_ready((out, h_n, c_n))

    ref_out, (ref_h, ref_c) = model.reference(x, hidden0)
    assert jnp.allclose(out, ref_out, atol=5e-5, rtol=1e-4)
    assert jnp.allclose(h_n, ref_h, atol=5e-5, rtol=1e-4)
    assert jnp.allclose(c_n, ref_c, atol=5e-5, rtol=1e-4)

    print("KERNEL_OK")
</pallas_src>

<mosaic_0001>
module attributes {stable_mosaic.version = 11 : i64} {
  func.func @kernel(%arg0: memref<72x128xf32, #tpu.memory_space<vmem>>, %arg1: memref<40x128xf32, #tpu.memory_space<vmem>>, %arg2: memref<8x128xf32, #tpu.memory_space<vmem>>) attributes {dimension_semantics = [], scalar_prefetch = 0 : i64, scratch_operands = 0 : i64, tpu.core_type = #tpu.core_type<tc>} {
    %c0 = arith.constant 0 : index
    %c0_0 = arith.constant 0 : index
    %0 = vector.load %arg1[%c0, %c0_0] : memref<40x128xf32, #tpu.memory_space<vmem>>, vector<32x128xf32>
    %c0_1 = arith.constant 0 : index
    %c0_2 = arith.constant 0 : index
    %1 = vector.load %arg0[%c0_1, %c0_2] : memref<72x128xf32, #tpu.memory_space<vmem>>, vector<8x32xf32>
    %c0_3 = arith.constant 0 : index
    %c32 = arith.constant 32 : index
    %2 = vector.load %arg0[%c0_3, %c32] : memref<72x128xf32, #tpu.memory_space<vmem>>, vector<8x32xf32>
    %c8 = arith.constant 8 : index
    %c0_4 = arith.constant 0 : index
    %3 = vector.load %arg0[%c8, %c0_4] : memref<72x128xf32, #tpu.memory_space<vmem>>, vector<8x128xf32>
    %cst = arith.constant dense<0.000000e+00> : vector<8x128xf32>
    %4 = tpu.matmul %1, %0, %cst {dimension_numbers = #tpu.dot_dimension_numbers<[1], [0], [0], [1], [0, 0, 1, 1], [], []>} : vector<8x32xf32>, vector<32x128xf32>, vector<8x128xf32> -> vector<8x128xf32>
    %5 = arith.addf %3, %4 : vector<8x128xf32>
    %6 = arith.negf %5 : vector<8x128xf32>
    %7 = math.exp %6 : vector<8x128xf32>
    %cst_5 = arith.constant 1.000000e+00 : f32
    %8 = vector.broadcast %cst_5 : f32 to vector<8x128xf32>
    %9 = arith.addf %8, %7 : vector<8x128xf32>
    %10 = arith.divf %8, %9 : vector<8x128xf32>
    %11 = vector.extract_strided_slice %10 {offsets = [0, 0], sizes = [8, 32], strides = [1, 1]} : vector<8x128xf32> to vector<8x32xf32>
    %12 = vector.extract_strided_slice %10 {offsets = [0, 32], sizes = [8, 32], strides = [1, 1]} : vector<8x128xf32> to vector<8x32xf32>
    %13 = vector.extract_strided_slice %10 {offsets = [0, 64], sizes = [8, 32], strides = [1, 1]} : vector<8x128xf32> to vector<8x32xf32>
    %cst_6 = arith.constant 2.000000e+00 : f32
    %14 = vector.broadcast %cst_6 : f32 to vector<8x32xf32>
    %15 = arith.mulf %14, %13 : vector<8x32xf32>
    %cst_7 = arith.constant 1.000000e+00 : f32
    %16 = vector.broadcast %cst_7 : f32 to vector<8x32xf32>
    %17 = arith.subf %15, %16 : vector<8x32xf32>
    %18 = vector.extract_strided_slice %10 {offsets = [0, 96], sizes = [8, 32], strides = [1, 1]} : vector<8x128xf32> to vector<8x32xf32>
    %19 = arith.mulf %12, %2 : vector<8x32xf32>
    %20 = arith.mulf %11, %17 : vector<8x32xf32>
    %21 = arith.addf %19, %20 : vector<8x32xf32>
    %22 = math.tanh %21 : vector<8x32xf32>
    %23 = arith.mulf %18, %22 : vector<8x32xf32>
    %c16 = arith.constant 16 : index
    %c0_8 = arith.constant 0 : index
    %24 = vector.load %arg0[%c16, %c0_8] : memref<72x128xf32, #tpu.memory_space<vmem>>, vector<8x128xf32>
    %cst_9 = arith.constant dense<0.000000e+00> : vector<8x128xf32>
    %25 = tpu.matmul %23, %0, %cst_9 {dimension_numbers = #tpu.dot_dimension_numbers<[1], [0], [0], [1], [0, 0, 1, 1], [], []>} : vector<8x32xf32>, vector<32x128xf32>, vector<8x128xf32> -> vector<8x128xf32>
    %26 = arith.addf %24, %25 : vector<8x128xf32>
    %27 = arith.negf %26 : vector<8x128xf32>
    %28 = math.exp %27 : vector<8x128xf32>
    %cst_10 = arith.constant 1.000000e+00 : f32
    %29 = vector.broadcast %cst_10 : f32 to vector<8x128xf32>
    %30 = arith.addf %29, %28 : vector<8x128xf32>
    %31 = arith.divf %29, %30 : vector<8x128xf32>
    %32 = vector.extract_strided_slice %31 {offsets = [0, 0], sizes = [8, 32], strides = [1, 1]} : vector<8x128xf32> to vector<8x32xf32>
    %33 = vector.extract_strided_slice %31 {offsets = [0, 32], sizes = [8, 32], strides = [1, 1]} : vector<8x128xf32> to vector<8x32xf32>
    %34 = vector.extract_strided_slice %31 {offsets = [0, 64], sizes = [8, 32], strides = [1, 1]} : vector<8x128xf32> to vector<8x32xf32>
    %cst_11 = arith.constant 2.000000e+00 : f32
    %35 = vector.broadcast %cst_11 : f32 to vector<8x32xf32>
    %36 = arith.mulf %35, %34 : vector<8x32xf32>
    %cst_12 = arith.constant 1.000000e+00 : f32
    %37 = vector.broadcast %cst_12 : f32 to vector<8x32xf32>
    %38 = arith.subf %36, %37 : vector<8x32xf32>
    %39 = vector.extract_strided_slice %31 {offsets = [0, 96], sizes = [8, 32], strides = [1, 1]} : vector<8x128xf32> to vector<8x32xf32>
    %40 = arith.mulf %33, %21 : vector<8x32xf32>
    %41 = arith.mulf %32, %38 : vector<8x32xf32>
    %42 = arith.addf %40, %41 : vector<8x32xf32>
    %43 = math.tanh %42 : vector<8x32xf32>
    %44 = arith.mulf %39, %43 : vector<8x32xf32>
    %c24 = arith.constant 24 : index
    %c0_13 = arith.constant 0 : index
    %45 = vector.load %arg0[%c24, %c0_13] : memref<72x128xf32, #tpu.memory_space<vmem>>, vector<8x128xf32>
    %cst_14 = arith.constant dense<0.000000e+00> : vector<8x128xf32>
    %46 = tpu.matmul %44, %0, %cst_14 {dimension_numbers = #tpu.dot_dimension_numbers<[1], [0], [0], [1], [0, 0, 1, 1], [], []>} : vector<8x32xf32>, vector<32x128xf32>, vector<8x128xf32> -> vector<8x128xf32>
    %47 = arith.addf %45, %46 : vector<8x128xf32>
    %48 = arith.negf %47 : vector<8x128xf32>
    %49 = math.exp %48 : vector<8x128xf32>
    %cst_15 = arith.constant 1.000000e+00 : f32
    %50 = vector.broadcast %cst_15 : f32 to vector<8x128xf32>
    %51 = arith.addf %50, %49 : vector<8x128xf32>
    %52 = arith.divf %50, %51 : vector<8x128xf32>
    %53 = vector.extract_strided_slice %52 {offsets = [0, 0], sizes = [8, 32], strides = [1, 1]} : vector<8x128xf32> to vector<8x32xf32>
    %54 = vector.extract_strided_slice %52 {offsets = [0, 32], sizes = [8, 32], strides = [1, 1]} : vector<8x128xf32> to vector<8x32xf32>
    %55 = vector.extract_strided_slice %52 {offsets = [0, 64], sizes = [8, 32], strides = [1, 1]} : vector<8x128xf32> to vector<8x32xf32>
    %cst_16 = arith.constant 2.000000e+00 : f32
    %56 = vector.broadcast %cst_16 : f32 to vector<8x32xf32>
    %57 = arith.mulf %56, %55 : vector<8x32xf32>
    %cst_17 = arith.constant 1.000000e+00 : f32
    %58 = vector.broadcast %cst_17 : f32 to vector<8x32xf32>
    %59 = arith.subf %57, %58 : vector<8x32xf32>
    %60 = vector.extract_strided_slice %52 {offsets = [0, 96], sizes = [8, 32], strides = [1, 1]} : vector<8x128xf32> to vector<8x32xf32>
    %61 = arith.mulf %54, %42 : vector<8x32xf32>
    %62 = arith.mulf %53, %59 : vector<8x32xf32>
    %63 = arith.addf %61, %62 : vector<8x32xf32>
    %64 = math.tanh %63 : vector<8x32xf32>
    %65 = arith.mulf %60, %64 : vector<8x32xf32>
    %c32_18 = arith.constant 32 : index
    %c0_19 = arith.constant 0 : index
    %66 = vector.load %arg0[%c32_18, %c0_19] : memref<72x128xf32, #tpu.memory_space<vmem>>, vector<8x128xf32>
    %cst_20 = arith.constant dense<0.000000e+00> : vector<8x128xf32>
    %67 = tpu.matmul %65, %0, %cst_20 {dimension_numbers = #tpu.dot_dimension_numbers<[1], [0], [0], [1], [0, 0, 1, 1], [], []>} : vector<8x32xf32>, vector<32x128xf32>, vector<8x128xf32> -> vector<8x128xf32>
    %68 = arith.addf %66, %67 : vector<8x128xf32>
    %69 = arith.negf %68 : vector<8x128xf32>
    %70 = math.exp %69 : vector<8x128xf32>
    %cst_21 = arith.constant 1.000000e+00 : f32
    %71 = vector.broadcast %cst_21 : f32 to vector<8x128xf32>
    %72 = arith.addf %71, %70 : vector<8x128xf32>
    %73 = arith.divf %71, %72 : vector<8x128xf32>
    %74 = vector.extract_strided_slice %73 {offsets = [0, 0], sizes = [8, 32], strides = [1, 1]} : vector<8x128xf32> to vector<8x32xf32>
    %75 = vector.extract_strided_slice %73 {offsets = [0, 32], sizes = [8, 32], strides = [1, 1]} : vector<8x128xf32> to vector<8x32xf32>
    %76 = vector.extract_strided_slice %73 {offsets = [0, 64], sizes = [8, 32], strides = [1, 1]} : vector<8x128xf32> to vector<8x32xf32>
    %cst_22 = arith.constant 2.000000e+00 : f32
    %77 = vector.broadcast %cst_22 : f32 to vector<8x32xf32>
    %78 = arith.mulf %77, %76 : vector<8x32xf32>
    %cst_23 = arith.constant 1.000000e+00 : f32
    %79 = vector.broadcast %cst_23 : f32 to vector<8x32xf32>
    %80 = arith.subf %78, %79 : vector<8x32xf32>
    %81 = vector.extract_strided_slice %73 {offsets = [0, 96], sizes = [8, 32], strides = [1, 1]} : vector<8x128xf32> to vector<8x32xf32>
    %82 = arith.mulf %75, %63 : vector<8x32xf32>
    %83 = arith.mulf %74, %80 : vector<8x32xf32>
    %84 = arith.addf %82, %83 : vector<8x32xf32>
    %85 = math.tanh %84 : vector<8x32xf32>
    %86 = arith.mulf %81, %85 : vector<8x32xf32>
    %c40 = arith.constant 40 : index
    %c0_24 = arith.constant 0 : index
    %87 = vector.load %arg0[%c40, %c0_24] : memref<72x128xf32, #tpu.memory_space<vmem>>, vector<8x128xf32>
    %cst_25 = arith.constant dense<0.000000e+00> : vector<8x128xf32>
    %88 = tpu.matmul %86, %0, %cst_25 {dimension_numbers = #tpu.dot_dimension_numbers<[1], [0], [0], [1], [0, 0, 1, 1], [], []>} : vector<8x32xf32>, vector<32x128xf32>, vector<8x128xf32> -> vector<8x128xf32>
    %89 = arith.addf %87, %88 : vector<8x128xf32>
    %90 = arith.negf %89 : vector<8x128xf32>
    %91 = math.exp %90 : vector<8x128xf32>
    %cst_26 = arith.constant 1.000000e+00 : f32
    %92 = vector.broadcast %cst_26 : f32 to vector<8x128xf32>
    %93 = arith.addf %92, %91 : vector<8x128xf32>
    %94 = arith.divf %92, %93 : vector<8x128xf32>
    %95 = vector.extract_strided_slice %94 {offsets = [0, 0], sizes = [8, 32], strides = [1, 1]} : vector<8x128xf32> to vector<8x32xf32>
    %96 = vector.extract_strided_slice %94 {offsets = [0, 32], sizes = [8, 32], strides = [1, 1]} : vector<8x128xf32> to vector<8x32xf32>
    %97 = vector.extract_strided_slice %94 {offsets = [0, 64], sizes = [8, 32], strides = [1, 1]} : vector<8x128xf32> to vector<8x32xf32>
    %cst_27 = arith.constant 2.000000e+00 : f32
    %98 = vector.broadcast %cst_27 : f32 to vector<8x32xf32>
    %99 = arith.mulf %98, %97 : vector<8x32xf32>
    %cst_28 = arith.constant 1.000000e+00 : f32
    %100 = vector.broadcast %cst_28 : f32 to vector<8x32xf32>
    %101 = arith.subf %99, %100 : vector<8x32xf32>
    %102 = vector.extract_strided_slice %94 {offsets = [0, 96], sizes = [8, 32], strides = [1, 1]} : vector<8x128xf32> to vector<8x32xf32>
    %103 = arith.mulf %96, %84 : vector<8x32xf32>
    %104 = arith.mulf %95, %101 : vector<8x32xf32>
    %105 = arith.addf %103, %104 : vector<8x32xf32>
    %106 = math.tanh %105 : vector<8x32xf32>
    %107 = arith.mulf %102, %106 : vector<8x32xf32>
    %c48 = arith.constant 48 : index
    %c0_29 = arith.constant 0 : index
    %108 = vector.load %arg0[%c48, %c0_29] : memref<72x128xf32, #tpu.memory_space<vmem>>, vector<8x128xf32>
    %cst_30 = arith.constant dense<0.000000e+00> : vector<8x128xf32>
    %109 = tpu.matmul %107, %0, %cst_30 {dimension_numbers = #tpu.dot_dimension_numbers<[1], [0], [0], [1], [0, 0, 1, 1], [], []>} : vector<8x32xf32>, vector<32x128xf32>, vector<8x128xf32> -> vector<8x128xf32>
    %110 = arith.addf %108, %109 : vector<8x128xf32>
    %111 = arith.negf %110 : vector<8x128xf32>
    %112 = math.exp %111 : vector<8x128xf32>
    %cst_31 = arith.constant 1.000000e+00 : f32
    %113 = vector.broadcast %cst_31 : f32 to vector<8x128xf32>
    %114 = arith.addf %113, %112 : vector<8x128xf32>
    %115 = arith.divf %113, %114 : vector<8x128xf32>
    %116 = vector.extract_strided_slice %115 {offsets = [0, 0], sizes = [8, 32], strides = [1, 1]} : vector<8x128xf32> to vector<8x32xf32>
    %117 = vector.extract_strided_slice %115 {offsets = [0, 32], sizes = [8, 32], strides = [1, 1]} : vector<8x128xf32> to vector<8x32xf32>
    %118 = vector.extract_strided_slice %115 {offsets = [0, 64], sizes = [8, 32], strides = [1, 1]} : vector<8x128xf32> to vector<8x32xf32>
    %cst_32 = arith.constant 2.000000e+00 : f32
    %119 = vector.broadcast %cst_32 : f32 to vector<8x32xf32>
    %120 = arith.mulf %119, %118 : vector<8x32xf32>
    %cst_33 = arith.constant 1.000000e+00 : f32
    %121 = vector.broadcast %cst_33 : f32 to vector<8x32xf32>
    %122 = arith.subf %120, %121 : vector<8x32xf32>
    %123 = vector.extract_strided_slice %115 {offsets = [0, 96], sizes = [8, 32], strides = [1, 1]} : vector<8x128xf32> to vector<8x32xf32>
    %124 = arith.mulf %117, %105 : vector<8x32xf32>
    %125 = arith.mulf %116, %122 : vector<8x32xf32>
    %126 = arith.addf %124, %125 : vector<8x32xf32>
    %127 = math.tanh %126 : vector<8x32xf32>
    %128 = arith.mulf %123, %127 : vector<8x32xf32>
    %c56 = arith.constant 56 : index
    %c0_34 = arith.constant 0 : index
    %129 = vector.load %arg0[%c56, %c0_34] : memref<72x128xf32, #tpu.memory_space<vmem>>, vector<8x128xf32>
    %cst_35 = arith.constant dense<0.000000e+00> : vector<8x128xf32>
    %130 = tpu.matmul %128, %0, %cst_35 {dimension_numbers = #tpu.dot_dimension_numbers<[1], [0], [0], [1], [0, 0, 1, 1], [], []>} : vector<8x32xf32>, vector<32x128xf32>, vector<8x128xf32> -> vector<8x128xf32>
    %131 = arith.addf %129, %130 : vector<8x128xf32>
    %132 = arith.negf %131 : vector<8x128xf32>
    %133 = math.exp %132 : vector<8x128xf32>
    %cst_36 = arith.constant 1.000000e+00 : f32
    %134 = vector.broadcast %cst_36 : f32 to vector<8x128xf32>
    %135 = arith.addf %134, %133 : vector<8x128xf32>
    %136 = arith.divf %134, %135 : vector<8x128xf32>
    %137 = vector.extract_strided_slice %136 {offsets = [0, 0], sizes = [8, 32], strides = [1, 1]} : vector<8x128xf32> to vector<8x32xf32>
    %138 = vector.extract_strided_slice %136 {offsets = [0, 32], sizes = [8, 32], strides = [1, 1]} : vector<8x128xf32> to vector<8x32xf32>
    %139 = vector.extract_strided_slice %136 {offsets = [0, 64], sizes = [8, 32], strides = [1, 1]} : vector<8x128xf32> to vector<8x32xf32>
    %cst_37 = arith.constant 2.000000e+00 : f32
    %140 = vector.broadcast %cst_37 : f32 to vector<8x32xf32>
    %141 = arith.mulf %140, %139 : vector<8x32xf32>
    %cst_38 = arith.constant 1.000000e+00 : f32
    %142 = vector.broadcast %cst_38 : f32 to vector<8x32xf32>
    %143 = arith.subf %141, %142 : vector<8x32xf32>
    %144 = vector.extract_strided_slice %136 {offsets = [0, 96], sizes = [8, 32], strides = [1, 1]} : vector<8x128xf32> to vector<8x32xf32>
    %145 = arith.mulf %138, %126 : vector<8x32xf32>
    %146 = arith.mulf %137, %143 : vector<8x32xf32>
    %147 = arith.addf %145, %146 : vector<8x32xf32>
    %148 = math.tanh %147 : vector<8x32xf32>
    %149 = arith.mulf %144, %148 : vector<8x32xf32>
    %c64 = arith.constant 64 : index
    %c0_39 = arith.constant 0 : index
    %150 = vector.load %arg0[%c64, %c0_39] : memref<72x128xf32, #tpu.memory_space<vmem>>, vector<8x128xf32>
    %cst_40 = arith.constant dense<0.000000e+00> : vector<8x128xf32>
    %151 = tpu.matmul %149, %0, %cst_40 {dimension_numbers = #tpu.dot_dimension_numbers<[1], [0], [0], [1], [0, 0, 1, 1], [], []>} : vector<8x32xf32>, vector<32x128xf32>, vector<8x128xf32> -> vector<8x128xf32>
    %152 = arith.addf %150, %151 : vector<8x128xf32>
    %153 = arith.negf %152 : vector<8x128xf32>
    %154 = math.exp %153 : vector<8x128xf32>
    %cst_41 = arith.constant 1.000000e+00 : f32
    %155 = vector.broadcast %cst_41 : f32 to vector<8x128xf32>
    %156 = arith.addf %155, %154 : vector<8x128xf32>
    %157 = arith.divf %155, %156 : vector<8x128xf32>
    %158 = vector.extract_strided_slice %157 {offsets = [0, 0], sizes = [8, 32], strides = [1, 1]} : vector<8x128xf32> to vector<8x32xf32>
    %159 = vector.extract_strided_slice %157 {offsets = [0, 32], sizes = [8, 32], strides = [1, 1]} : vector<8x128xf32> to vector<8x32xf32>
    %160 = vector.extract_strided_slice %157 {offsets = [0, 64], sizes = [8, 32], strides = [1, 1]} : vector<8x128xf32> to vector<8x32xf32>
    %cst_42 = arith.constant 2.000000e+00 : f32
    %161 = vector.broadcast %cst_42 : f32 to vector<8x32xf32>
    %162 = arith.mulf %161, %160 : vector<8x32xf32>
    %cst_43 = arith.constant 1.000000e+00 : f32
    %163 = vector.broadcast %cst_43 : f32 to vector<8x32xf32>
    %164 = arith.subf %162, %163 : vector<8x32xf32>
    %165 = vector.extract_strided_slice %157 {offsets = [0, 96], sizes = [8, 32], strides = [1, 1]} : vector<8x128xf32> to vector<8x32xf32>
    %166 = arith.mulf %159, %147 : vector<8x32xf32>
    %167 = arith.mulf %158, %164 : vector<8x32xf32>
    %168 = arith.addf %166, %167 : vector<8x32xf32>
    %169 = math.tanh %168 : vector<8x32xf32>
    %170 = arith.mulf %165, %169 : vector<8x32xf32>
    %c32_44 = arith.constant 32 : index
    %c0_45 = arith.constant 0 : index
    %171 = vector.load %arg1[%c32_44, %c0_45] : memref<40x128xf32, #tpu.memory_space<vmem>>, vector<1x32xf32>
    %c33 = arith.constant 33 : index
    %c0_46 = arith.constant 0 : index
    %172 = vector.load %arg1[%c33, %c0_46] : memref<40x128xf32, #tpu.memory_space<vmem>>, vector<1x1xf32>
    %173 = vector.broadcast %171 : vector<1x32xf32> to vector<8x32xf32>
    %174 = arith.mulf %170, %173 : vector<8x32xf32>
    %cst_47 = arith.constant dense<0.000000e+00> : vector<8xf32>
    %175 = vector.multi_reduction <add>, %174, %cst_47 [1] : vector<8x32xf32> to vector<8xf32>
    %176 = vector.shape_cast %175 : vector<8xf32> to vector<8x1xf32>
    %177 = vector.broadcast %172 : vector<1x1xf32> to vector<8x1xf32>
    %178 = arith.addf %176, %177 : vector<8x1xf32>
    %cst_48 = arith.constant 0.000000e+00 : f32
    %179 = vector.broadcast %cst_48 : f32 to vector<8x63xf32>
    %180 = tpu.concatenate %170, %168, %178, %179 in 1 : vector<8x32xf32>, vector<8x32xf32>, vector<8x1xf32>, vector<8x63xf32> -> vector<8x128xf32>
    %c0_49 = arith.constant 0 : index
    %c0_50 = arith.constant 0 : index
    %181 = vector.load %arg2[%c0_49, %c0_50] : memref<8x128xf32, #tpu.memory_space<vmem>>, vector<8x128xf32>
    tpu.vector_store %arg2[%c0_49, %c0_50], %180 {strides = array<i32>} : memref<8x128xf32, #tpu.memory_space<vmem>>, vector<8x128xf32>,
    return
  }
}

</mosaic_0001>

<llo_original>
// kernel: a_call__.1
$region0: #{a_call__.1}
  #allocation0 [shape = 'u32[]', space=smem, size = 0x4, offset = 0x4, fixed_abs, tag = 'smem constant byte address 0x4 - core index']
  #allocation1 [shape = 'u32[144,128]{1,0:T(1,128)}', space=vmem, size = 0x12000, scoped, tag = 'internal scratch']
  %s0 = inlined_call_operand.vmem [shape: f32[72,128], index: 0, kind: input, shape index: {}]
  %s1 = inlined_call_operand.vmem [shape: f32[40,128], index: 1, kind: input, shape index: {}]
  %s2 = inlined_call_operand.vmem [shape: f32[8,128], index: 2, kind: output, shape index: {}]
  %s3 = sld [smem:[#allocation0]]
  $region18: #{a_call__.1} parent=0
    _
  %s5 = ssub.s32 1, %s3
  %s6 = scalar_select 0, %s5, %s3
  // Predicated region
  $region2: #{a_call__.1} parent=0 // pred_check
    _
  $region3: #{a_call__.1} parent=0 // pred_check_branch
    %8 = sbr.rel (0) target = $region5
  $region4: #{a_call__.1} parent=0 // pred_region
    _
  $region5: #{a_call__.1} parent=0 // pred_fallthru
    _
  // Predicated region
  $region6: #{a_call__.1} parent=0 // pred_check
    _
  $region7: #{a_call__.1} parent=0 // pred_check_branch
    %10 = sbr.rel (0) target = $region9
  $region8: #{a_call__.1} parent=0 // pred_region
    _
  $region9: #{a_call__.1} parent=0 // pred_fallthru
    _
  %v11 = vld [vmem:[%s1] sm:$0xff]
  %v12 = vld [vmem:[%s1 + $0x8] sm:$0xff]
  %v13 = vld [vmem:[%s1 + $0x10] sm:$0xff]
  %v14 = vld [vmem:[%s1 + $0x18] sm:$0xff]
  %v15 = vld [vmem:[%s0] sm:$0xff]
  %v16 = vld [vmem:[%s0 + $0x8] sm:$0xff]
  %vm17 = vcmask 261120
  %v19 = vsel %vm17, %v15, 0
  %21 = vmatprep.subr.mxu0 0.0
  %22 = vmatpush1.msra.mxu0 %v11
  %23 = vmatprep.subr.mxu0 0.0
  %24 = vmatpush1.msra.mxu0 %v12
  %25 = vmatprep.subr.mxu0 0.0
  %26 = vmatpush1.msra.mxu0 %v13
  %27 = vmatprep.subr.mxu0 0.0
  %28 = vmatpush1.msra.mxu0 %v14
  %29 = vmatprep.subr.mxu0 0.0
  %30 = vmatpush1.msra.mxu0 0.0
  %31 = vmatprep.subr.mxu0 0.0
  %32 = vmatpush1.msra.mxu0 0.0
  %33 = vmatprep.subr.mxu0 0.0
  %34 = vmatpush1.msra.mxu0 0.0
  %35 = vmatprep.subr.mxu0 0.0
  %36 = vmatpush1.msra.mxu0 0.0
  %37 = vmatprep.subr.mxu0 0.0
  %38 = vmatpush1.msra.mxu0 0.0
  %39 = vmatprep.subr.mxu0 0.0
  %40 = vmatpush1.msra.mxu0 0.0
  %41 = vmatprep.subr.mxu0 0.0
  %42 = vmatpush1.msra.mxu0 0.0
  %43 = vmatprep.subr.mxu0 0.0
  %44 = vmatpush1.msra.mxu0 0.0
  %45 = vmatprep.subr.mxu0 0.0
  %46 = vmatpush1.msra.mxu0 0.0
  %47 = vmatprep.subr.mxu0 0.0
  %48 = vmatpush1.msra.mxu0 0.0
  %49 = vmatprep.subr.mxu0 0.0
  %50 = vmatpush1.msra.mxu0 0.0
  %51 = vmatprep.subr.mxu0 0.0
  %52 = vmatpush1.msra.mxu0 0.0
  %53 = vmatprep.subr.mxu0 0.0
  %54 = vmatpush1.msra.mxu0 0.0
  %55 = vmatprep.subr.mxu0 0.0
  %56 = vmatpush1.msra.mxu0 0.0
  %57 = vmatprep.subr.mxu0 0.0
  %58 = vmatpush1.msra.mxu0 0.0
  %59 = vmatprep.subr.mxu0 0.0
  %60 = vmatpush1.msra.mxu0 0.0
  %61 = vmatprep.subr.mxu0 0.0
  %62 = vmatpush1.msra.mxu0 0.0
  %63 = vmatprep.subr.mxu0 0.0
  %64 = vmatpush1.msra.mxu0 0.0
  %65 = vmatprep.subr.mxu0 0.0
  %66 = vmatpush1.msra.mxu0 0.0
  %67 = vmatprep.subr.mxu0 0.0
  %68 = vmatpush1.msra.mxu0 0.0
  %69 = vmatprep.subr.mxu0 0.0
  %70 = vmatpush1.msra.mxu0 0.0
  %71 = vmatprep.subr.mxu0 0.0
  %72 = vmatpush1.msra.mxu0 0.0
  %73 = vmatprep.subr.mxu0 0.0
  %74 = vmatpush1.msra.mxu0 0.0
  %75 = vmatprep.subr.mxu0 0.0
  %76 = vmatpush1.msra.mxu0 0.0
  %77 = vmatprep.subr.mxu0 0.0
  %78 = vmatpush1.msra.mxu0 0.0
  %79 = vmatprep.subr.mxu0 0.0
  %80 = vmatpush1.msra.mxu0 0.0
  %81 = vmatprep.subr.mxu0 0.0
  %82 = vmatpush1.msra.mxu0 0.0
  %83 = vmatprep.subr.mxu0 0.0
  %84 = vmatpush1.msra.mxu0 0.0
  %85 = vmatprep.mubr.f32.mxu0 0.0
  %86 = vmatmul.mubr.f32.gmra.mrb[0].mxu0 %v19
  %v87 = vpop.f32.mrb[0].mxu0
  %v88 = vadd.f32 0.0, %v87
  %v89 = vpop.f32.mrb[0].mxu0
  %90 = vdwg.mxu0
  %v91 = vadd.f32 %v16, %v88
  %v92 = vxor.u32 %v91, 2147483648
  %v93 = vmul.f32 %v92, 1.442695
  %v94 = vpow.pop %v93
  %v95 = vadd.f32 %v94, 1.0
  %v96 = vrcp.pop %v95
  %v97 = vmul.f32 1.0, %v96
  %v98 = vmul.f32 %v97, 2.0
  %v99 = vsub.f32 %v98, 1.0
  %v100 = vmul.f32 %v97, %v15
  %102 = vrot.lane.b32.xlu0 %v99, 64
  %v103 = vpop.permute.xlu0 %102
  %v105 = vmul.f32 %v97, %v103
  %107 = vrot.lane.b32.xlu0 %v105, 32
  %v108 = vpop.permute.xlu0 %107
  %v110 = vadd.f32 %v100, %v108
  %v111 = vtanh.pop %v110
  %113 = vrot.lane.b32.xlu0 %v111, 64
  %v114 = vpop.permute.xlu0 %113
  %v116 = vmul.f32 %v97, %v114
  %v117 = vld [vmem:[%s0 + $0x10] sm:$0xff]
  %119 = vrot.lane.b32.xlu0 %v116, 32
  %v120 = vpop.permute.xlu0 %119
  %v121 = vsel %vm17, %v120, 0
  %123 = vmatprep.subr.mxu0 0.0
  %124 = vmatpush1.msra.mxu0 %v11
  %125 = vmatprep.subr.mxu0 0.0
  %126 = vmatpush1.msra.mxu0 %v12
  %127 = vmatprep.subr.mxu0 0.0
  %128 = vmatpush1.msra.mxu0 %v13
  %129 = vmatprep.subr.mxu0 0.0
  %130 = vmatpush1.msra.mxu0 %v14
  %131 = vmatprep.subr.mxu0 0.0
  %132 = vmatpush1.msra.mxu0 0.0
  %133 = vmatprep.subr.mxu0 0.0
  %134 = vmatpush1.msra.mxu0 0.0
  %135 = vmatprep.subr.mxu0 0.0
  %136 = vmatpush1.msra.mxu0 0.0
  %137 = vmatprep.subr.mxu0 0.0
  %138 = vmatpush1.msra.mxu0 0.0
  %139 = vmatprep.subr.mxu0 0.0
  %140 = vmatpush1.msra.mxu0 0.0
  %141 = vmatprep.subr.mxu0 0.0
  %142 = vmatpush1.msra.mxu0 0.0
  %143 = vmatprep.subr.mxu0 0.0
  %144 = vmatpush1.msra.mxu0 0.0
  %145 = vmatprep.subr.mxu0 0.0
  %146 = vmatpush1.msra.mxu0 0.0
  %147 = vmatprep.subr.mxu0 0.0
  %148 = vmatpush1.msra.mxu0 0.0
  %149 = vmatprep.subr.mxu0 0.0
  %150 = vmatpush1.msra.mxu0 0.0
  %151 = vmatprep.subr.mxu0 0.0
  %152 = vmatpush1.msra.mxu0 0.0
  %153 = vmatprep.subr.mxu0 0.0
  %154 = vmatpush1.msra.mxu0 0.0
  %155 = vmatprep.subr.mxu0 0.0
  %156 = vmatpush1.msra.mxu0 0.0
  %157 = vmatprep.subr.mxu0 0.0
  %158 = vmatpush1.msra.mxu0 0.0
  %159 = vmatprep.subr.mxu0 0.0
  %160 = vmatpush1.msra.mxu0 0.0
  %161 = vmatprep.subr.mxu0 0.0
  %162 = vmatpush1.msra.mxu0 0.0
  %163 = vmatprep.subr.mxu0 0.0
  %164 = vmatpush1.msra.mxu0 0.0
  %165 = vmatprep.subr.mxu0 0.0
  %166 = vmatpush1.msra.mxu0 0.0
  %167 = vmatprep.subr.mxu0 0.0
  %168 = vmatpush1.msra.mxu0 0.0
  %169 = vmatprep.subr.mxu0 0.0
  %170 = vmatpush1.msra.mxu0 0.0
  %171 = vmatprep.subr.mxu0 0.0
  %172 = vmatpush1.msra.mxu0 0.0
  %173 = vmatprep.subr.mxu0 0.0
  %174 = vmatpush1.msra.mxu0 0.0
  %175 = vmatprep.subr.mxu0 0.0
  %176 = vmatpush1.msra.mxu0 0.0
  %177 = vmatprep.subr.mxu0 0.0
  %178 = vmatpush1.msra.mxu0 0.0
  %179 = vmatprep.subr.mxu0 0.0
  %180 = vmatpush1.msra.mxu0 0.0
  %181 = vmatprep.subr.mxu0 0.0
  %182 = vmatpush1.msra.mxu0 0.0
  %183 = vmatprep.subr.mxu0 0.0
  %184 = vmatpush1.msra.mxu0 0.0
  %185 = vmatprep.subr.mxu0 0.0
  %186 = vmatpush1.msra.mxu0 0.0
  %187 = vmatprep.mubr.f32.mxu0 0.0
  %188 = vmatmul.mubr.f32.gmra.mrb[0].mxu0 %v121
  %v189 = vpop.f32.mrb[0].mxu0
  %v190 = vadd.f32 0.0, %v189
  %v191 = vpop.f32.mrb[0].mxu0
  %192 = vdwg.mxu0
  %v193 = vadd.f32 %v117, %v190
  %v194 = vxor.u32 %v193, 2147483648
  %v195 = vmul.f32 %v194, 1.442695
  %v196 = vpow.pop %v195
  %v197 = vadd.f32 %v196, 1.0
  %v198 = vrcp.pop %v197
  %v199 = vmul.f32 1.0, %v198
  %v200 = vmul.f32 %v199, 2.0
  %v201 = vsub.f32 %v200, 1.0
  %v202 = vmul.f32 %v199, %v110
  %204 = vrot.lane.b32.xlu0 %v201, 64
  %v205 = vpop.permute.xlu0 %204
  %v207 = vmul.f32 %v199, %v205
  %209 = vrot.lane.b32.xlu0 %v207, 32
  %v210 = vpop.permute.xlu0 %209
  %v212 = vadd.f32 %v202, %v210
  %v213 = vtanh.pop %v212
  %215 = vrot.lane.b32.xlu0 %v213, 64
  %v216 = vpop.permute.xlu0 %215
  %v218 = vmul.f32 %v199, %v216
  %v219 = vld [vmem:[%s0 + $0x18] sm:$0xff]
  %221 = vrot.lane.b32.xlu0 %v218, 32
  %v222 = vpop.permute.xlu0 %221
  %v223 = vsel %vm17, %v222, 0
  %225 = vmatprep.subr.mxu0 0.0
  %226 = vmatpush1.msra.mxu0 %v11
  %227 = vmatprep.subr.mxu0 0.0
  %228 = vmatpush1.msra.mxu0 %v12
  %229 = vmatprep.subr.mxu0 0.0
  %230 = vmatpush1.msra.mxu0 %v13
  %231 = vmatprep.subr.mxu0 0.0
  %232 = vmatpush1.msra.mxu0 %v14
  %233 = vmatprep.subr.mxu0 0.0
  %234 = vmatpush1.msra.mxu0 0.0
  %235 = vmatprep.subr.mxu0 0.0
  %236 = vmatpush1.msra.mxu0 0.0
  %237 = vmatprep.subr.mxu0 0.0
  %238 = vmatpush1.msra.mxu0 0.0
  %239 = vmatprep.subr.mxu0 0.0
  %240 = vmatpush1.msra.mxu0 0.0
  %241 = vmatprep.subr.mxu0 0.0
  %242 = vmatpush1.msra.mxu0 0.0
  %243 = vmatprep.subr.mxu0 0.0
  %244 = vmatpush1.msra.mxu0 0.0
  %245 = vmatprep.subr.mxu0 0.0
  %246 = vmatpush1.msra.mxu0 0.0
  %247 = vmatprep.subr.mxu0 0.0
  %248 = vmatpush1.msra.mxu0 0.0
  %249 = vmatprep.subr.mxu0 0.0
  %250 = vmatpush1.msra.mxu0 0.0
  %251 = vmatprep.subr.mxu0 0.0
  %252 = vmatpush1.msra.mxu0 0.0
  %253 = vmatprep.subr.mxu0 0.0
  %254 = vmatpush1.msra.mxu0 0.0
  %255 = vmatprep.subr.mxu0 0.0
  %256 = vmatpush1.msra.mxu0 0.0
  %257 = vmatprep.subr.mxu0 0.0
  %258 = vmatpush1.msra.mxu0 0.0
  %259 = vmatprep.subr.mxu0 0.0
  %260 = vmatpush1.msra.mxu0 0.0
  %261 = vmatprep.subr.mxu0 0.0
  %262 = vmatpush1.msra.mxu0 0.0
  %263 = vmatprep.subr.mxu0 0.0
  %264 = vmatpush1.msra.mxu0 0.0
  %265 = vmatprep.subr.mxu0 0.0
  %266 = vmatpush1.msra.mxu0 0.0
  %267 = vmatprep.subr.mxu0 0.0
  %268 = vmatpush1.msra.mxu0 0.0
  %269 = vmatprep.subr.mxu0 0.0
  %270 = vmatpush1.msra.mxu0 0.0
  %271 = vmatprep.subr.mxu0 0.0
  %272 = vmatpush1.msra.mxu0 0.0
  %273 = vmatprep.subr.mxu0 0.0
  %274 = vmatpush1.msra.mxu0 0.0
  %275 = vmatprep.subr.mxu0 0.0
  %276 = vmatpush1.msra.mxu0 0.0
  %277 = vmatprep.subr.mxu0 0.0
  %278 = vmatpush1.msra.mxu0 0.0
  %279 = vmatprep.subr.mxu0 0.0
  %280 = vmatpush1.msra.mxu0 0.0
  %281 = vmatprep.subr.mxu0 0.0
  %282 = vmatpush1.msra.mxu0 0.0
  %283 = vmatprep.subr.mxu0 0.0
  %284 = vmatpush1.msra.mxu0 0.0
  %285 = vmatprep.subr.mxu0 0.0
  %286 = vmatpush1.msra.mxu0 0.0
  %287 = vmatprep.subr.mxu0 0.0
  %288 = vmatpush1.msra.mxu0 0.0
  %289 = vmatprep.mubr.f32.mxu0 0.0
  %290 = vmatmul.mubr.f32.gmra.mrb[0].mxu0 %v223
  %v291 = vpop.f32.mrb[0].mxu0
  %v292 = vadd.f32 0.0, %v291
  %v293 = vpop.f32.mrb[0].mxu0
  %294 = vdwg.mxu0
  %v295 = vadd.f32 %v219, %v292
  %v296 = vxor.u32 %v295, 2147483648
  %v297 = vmul.f32 %v296, 1.442695
  %v298 = vpow.pop %v297
  %v299 = vadd.f32 %v298, 1.0
  %v300 = vrcp.pop %v299
  %v301 = vmul.f32 1.0, %v300
  %v302 = vmul.f32 %v301, 2.0
  %v303 = vsub.f32 %v302, 1.0
  %v304 = vmul.f32 %v301, %v212
  %306 = vrot.lane.b32.xlu0 %v303, 64
  %v307 = vpop.permute.xlu0 %306
  %v309 = vmul.f32 %v301, %v307
  %311 = vrot.lane.b32.xlu0 %v309, 32
  %v312 = vpop.permute.xlu0 %311
  %v314 = vadd.f32 %v304, %v312
  %v315 = vtanh.pop %v314
  %317 = vrot.lane.b32.xlu0 %v315, 64
  %v318 = vpop.permute.xlu0 %317
  %v320 = vmul.f32 %v301, %v318
  %v321 = vld [vmem:[%s0 + $0x20] sm:$0xff]
  %323 = vrot.lane.b32.xlu0 %v320, 32
  %v324 = vpop.permute.xlu0 %323
  %v325 = vsel %vm17, %v324, 0
  %327 = vmatprep.subr.mxu0 0.0
  %328 = vmatpush1.msra.mxu0 %v11
  %329 = vmatprep.subr.mxu0 0.0
  %330 = vmatpush1.msra.mxu0 %v12
  %331 = vmatprep.subr.mxu0 0.0
  %332 = vmatpush1.msra.mxu0 %v13
  %333 = vmatprep.subr.mxu0 0.0
  %334 = vmatpush1.msra.mxu0 %v14
  %335 = vmatprep.subr.mxu0 0.0
  %336 = vmatpush1.msra.mxu0 0.0
  %337 = vmatprep.subr.mxu0 0.0
  %338 = vmatpush1.msra.mxu0 0.0
  %339 = vmatprep.subr.mxu0 0.0
  %340 = vmatpush1.msra.mxu0 0.0
  %341 = vmatprep.subr.mxu0 0.0
  %342 = vmatpush1.msra.mxu0 0.0
  %343 = vmatprep.subr.mxu0 0.0
  %344 = vmatpush1.msra.mxu0 0.0
  %345 = vmatprep.subr.mxu0 0.0
  %346 = vmatpush1.msra.mxu0 0.0
  %347 = vmatprep.subr.mxu0 0.0
  %348 = vmatpush1.msra.mxu0 0.0
  %349 = vmatprep.subr.mxu0 0.0
  %350 = vmatpush1.msra.mxu0 0.0
  %351 = vmatprep.subr.mxu0 0.0
  %352 = vmatpush1.msra.mxu0 0.0
  %353 = vmatprep.subr.mxu0 0.0
  %354 = vmatpush1.msra.mxu0 0.0
  %355 = vmatprep.subr.mxu0 0.0
  %356 = vmatpush1.msra.mxu0 0.0
  %357 = vmatprep.subr.mxu0 0.0
  %358 = vmatpush1.msra.mxu0 0.0
  %359 = vmatprep.subr.mxu0 0.0
  %360 = vmatpush1.msra.mxu0 0.0
  %361 = vmatprep.subr.mxu0 0.0
  %362 = vmatpush1.msra.mxu0 0.0
  %363 = vmatprep.subr.mxu0 0.0
  %364 = vmatpush1.msra.mxu0 0.0
  %365 = vmatprep.subr.mxu0 0.0
  %366 = vmatpush1.msra.mxu0 0.0
  %367 = vmatprep.subr.mxu0 0.0
  %368 = vmatpush1.msra.mxu0 0.0
  %369 = vmatprep.subr.mxu0 0.0
  %370 = vmatpush1.msra.mxu0 0.0
  %371 = vmatprep.subr.mxu0 0.0
  %372 = vmatpush1.msra.mxu0 0.0
  %373 = vmatprep.subr.mxu0 0.0
  %374 = vmatpush1.msra.mxu0 0.0
  %375 = vmatprep.subr.mxu0 0.0
  %376 = vmatpush1.msra.mxu0 0.0
  %377 = vmatprep.subr.mxu0 0.0
  %378 = vmatpush1.msra.mxu0 0.0
  %379 = vmatprep.subr.mxu0 0.0
  %380 = vmatpush1.msra.mxu0 0.0
  %381 = vmatprep.subr.mxu0 0.0
  %382 = vmatpush1.msra.mxu0 0.0
  %383 = vmatprep.subr.mxu0 0.0
  %384 = vmatpush1.msra.mxu0 0.0
  %385 = vmatprep.subr.mxu0 0.0
  %386 = vmatpush1.msra.mxu0 0.0
  %387 = vmatprep.subr.mxu0 0.0
  %388 = vmatpush1.msra.mxu0 0.0
  %389 = vmatprep.subr.mxu0 0.0
  %390 = vmatpush1.msra.mxu0 0.0
  %391 = vmatprep.mubr.f32.mxu0 0.0
  %392 = vmatmul.mubr.f32.gmra.mrb[0].mxu0 %v325
  %v393 = vpop.f32.mrb[0].mxu0
  %v394 = vadd.f32 0.0, %v393
  %v395 = vpop.f32.mrb[0].mxu0
  %396 = vdwg.mxu0
  %v397 = vadd.f32 %v321, %v394
  %v398 = vxor.u32 %v397, 2147483648
  %v399 = vmul.f32 %v398, 1.442695
  %v400 = vpow.pop %v399
  %v401 = vadd.f32 %v400, 1.0
  %v402 = vrcp.pop %v401
  %v403 = vmul.f32 1.0, %v402
  %v404 = vmul.f32 %v403, 2.0
  %v405 = vsub.f32 %v404, 1.0
  %v406 = vmul.f32 %v403, %v314
  %408 = vrot.lane.b32.xlu0 %v405, 64
  %v409 = vpop.permute.xlu0 %408
  %v411 = vmul.f32 %v403, %v409
  %413 = vrot.lane.b32.xlu0 %v411, 32
  %v414 = vpop.permute.xlu0 %413
  %v416 = vadd.f32 %v406, %v414
  %v417 = vtanh.pop %v416
  %419 = vrot.lane.b32.xlu0 %v417, 64
  %v420 = vpop.permute.xlu0 %419
  %v422 = vmul.f32 %v403, %v420
  %v423 = vld [vmem:[%s0 + $0x28] sm:$0xff]
  %425 = vrot.lane.b32.xlu0 %v422, 32
  %v426 = vpop.permute.xlu0 %425
  %v427 = vsel %vm17, %v426, 0
  %429 = vmatprep.subr.mxu0 0.0
  %430 = vmatpush1.msra.mxu0 %v11
  %431 = vmatprep.subr.mxu0 0.0
  %432 = vmatpush1.msra.mxu0 %v12
  %433 = vmatprep.subr.mxu0 0.0
  %434 = vmatpush1.msra.mxu0 %v13
  %435 = vmatprep.subr.mxu0 0.0
  %436 = vmatpush1.msra.mxu0 %v14
  %437 = vmatprep.subr.mxu0 0.0
  %438 = vmatpush1.msra.mxu0 0.0
  %439 = vmatprep.subr.mxu0 0.0
  %440 = vmatpush1.msra.mxu0 0.0
  %441 = vmatprep.subr.mxu0 0.0
  %442 = vmatpush1.msra.mxu0 0.0
  %443 = vmatprep.subr.mxu0 0.0
  %444 = vmatpush1.msra.mxu0 0.0
  %445 = vmatprep.subr.mxu0 0.0
  %446 = vmatpush1.msra.mxu0 0.0
  %447 = vmatprep.subr.mxu0 0.0
  %448 = vmatpush1.msra.mxu0 0.0
  %449 = vmatprep.subr.mxu0 0.0
  %450 = vmatpush1.msra.mxu0 0.0
  %451 = vmatprep.subr.mxu0 0.0
  %452 = vmatpush1.msra.mxu0 0.0
  %453 = vmatprep.subr.mxu0 0.0
  %454 = vmatpush1.msra.mxu0 0.0
  %455 = vmatprep.subr.mxu0 0.0
  %456 = vmatpush1.msra.mxu0 0.0
  %457 = vmatprep.subr.mxu0 0.0
  %458 = vmatpush1.msra.mxu0 0.0
  %459 = vmatprep.subr.mxu0 0.0
  %460 = vmatpush1.msra.mxu0 0.0
  %461 = vmatprep.subr.mxu0 0.0
  %462 = vmatpush1.msra.mxu0 0.0
  %463 = vmatprep.subr.mxu0 0.0
  %464 = vmatpush1.msra.mxu0 0.0
  %465 = vmatprep.subr.mxu0 0.0
  %466 = vmatpush1.msra.mxu0 0.0
  %467 = vmatprep.subr.mxu0 0.0
  %468 = vmatpush1.msra.mxu0 0.0
  %469 = vmatprep.subr.mxu0 0.0
  %470 = vmatpush1.msra.mxu0 0.0
  %471 = vmatprep.subr.mxu0 0.0
  %472 = vmatpush1.msra.mxu0 0.0
  %473 = vmatprep.subr.mxu0 0.0
  %474 = vmatpush1.msra.mxu0 0.0
  %475 = vmatprep.subr.mxu0 0.0
  %476 = vmatpush1.msra.mxu0 0.0
  %477 = vmatprep.subr.mxu0 0.0
  %478 = vmatpush1.msra.mxu0 0.0
  %479 = vmatprep.subr.mxu0 0.0
  %480 = vmatpush1.msra.mxu0 0.0
  %481 = vmatprep.subr.mxu0 0.0
  %482 = vmatpush1.msra.mxu0 0.0
  %483 = vmatprep.subr.mxu0 0.0
  %484 = vmatpush1.msra.mxu0 0.0
  %485 = vmatprep.subr.mxu0 0.0
  %486 = vmatpush1.msra.mxu0 0.0
  %487 = vmatprep.subr.mxu0 0.0
  %488 = vmatpush1.msra.mxu0 0.0
  %489 = vmatprep.subr.mxu0 0.0
  %490 = vmatpush1.msra.mxu0 0.0
  %491 = vmatprep.subr.mxu0 0.0
  %492 = vmatpush1.msra.mxu0 0.0
  %493 = vmatprep.mubr.f32.mxu0 0.0
  %494 = vmatmul.mubr.f32.gmra.mrb[0].mxu0 %v427
  %v495 = vpop.f32.mrb[0].mxu0
  %v496 = vadd.f32 0.0, %v495
  %v497 = vpop.f32.mrb[0].mxu0
  %498 = vdwg.mxu0
  %v499 = vadd.f32 %v423, %v496
  %v500 = vxor.u32 %v499, 2147483648
  %v501 = vmul.f32 %v500, 1.442695
  %v502 = vpow.pop %v501
  %v503 = vadd.f32 %v502, 1.0
  %v504 = vrcp.pop %v503
  %v505 = vmul.f32 1.0, %v504
  %v506 = vmul.f32 %v505, 2.0
  %v507 = vsub.f32 %v506, 1.0
  %v508 = vmul.f32 %v505, %v416
  %510 = vrot.lane.b32.xlu0 %v507, 64
  %v511 = vpop.permute.xlu0 %510
  %v513 = vmul.f32 %v505, %v511
  %515 = vrot.lane.b32.xlu0 %v513, 32
  %v516 = vpop.permute.xlu0 %515
  %v518 = vadd.f32 %v508, %v516
  %v519 = vtanh.pop %v518
  %521 = vrot.lane.b32.xlu0 %v519, 64
  %v522 = vpop.permute.xlu0 %521
  %v524 = vmul.f32 %v505, %v522
  %v525 = vld [vmem:[%s0 + $0x30] sm:$0xff]
  %527 = vrot.lane.b32.xlu0 %v524, 32
  %v528 = vpop.permute.xlu0 %527
  %v529 = vsel %vm17, %v528, 0
  %531 = vmatprep.subr.mxu0 0.0
  %532 = vmatpush1.msra.mxu0 %v11
  %533 = vmatprep.subr.mxu0 0.0
  %534 = vmatpush1.msra.mxu0 %v12
  %535 = vmatprep.subr.mxu0 0.0
  %536 = vmatpush1.msra.mxu0 %v13
  %537 = vmatprep.subr.mxu0 0.0
  %538 = vmatpush1.msra.mxu0 %v14
  %539 = vmatprep.subr.mxu0 0.0
  %540 = vmatpush1.msra.mxu0 0.0
  %541 = vmatprep.subr.mxu0 0.0
  %542 = vmatpush1.msra.mxu0 0.0
  %543 = vmatprep.subr.mxu0 0.0
  %544 = vmatpush1.msra.mxu0 0.0
  %545 = vmatprep.subr.mxu0 0.0
  %546 = vmatpush1.msra.mxu0 0.0
  %547 = vmatprep.subr.mxu0 0.0
  %548 = vmatpush1.msra.mxu0 0.0
  %549 = vmatprep.subr.mxu0 0.0
  %550 = vmatpush1.msra.mxu0 0.0
  %551 = vmatprep.subr.mxu0 0.0
  %552 = vmatpush1.msra.mxu0 0.0
  %553 = vmatprep.subr.mxu0 0.0
  %554 = vmatpush1.msra.mxu0 0.0
  %555 = vmatprep.subr.mxu0 0.0
  %556 = vmatpush1.msra.mxu0 0.0
  %557 = vmatprep.subr.mxu0 0.0
  %558 = vmatpush1.msra.mxu0 0.0
  %559 = vmatprep.subr.mxu0 0.0
  %560 = vmatpush1.msra.mxu0 0.0
  %561 = vmatprep.subr.mxu0 0.0
  %562 = vmatpush1.msra.mxu0 0.0
  %563 = vmatprep.subr.mxu0 0.0
  %564 = vmatpush1.msra.mxu0 0.0
  %565 = vmatprep.subr.mxu0 0.0
  %566 = vmatpush1.msra.mxu0 0.0
  %567 = vmatprep.subr.mxu0 0.0
  %568 = vmatpush1.msra.mxu0 0.0
  %569 = vmatprep.subr.mxu0 0.0
  %570 = vmatpush1.msra.mxu0 0.0
  %571 = vmatprep.subr.mxu0 0.0
  %572 = vmatpush1.msra.mxu0 0.0
  %573 = vmatprep.subr.mxu0 0.0
  %574 = vmatpush1.msra.mxu0 0.0
  %575 = vmatprep.subr.mxu0 0.0
  %576 = vmatpush1.msra.mxu0 0.0
  %577 = vmatprep.subr.mxu0 0.0
  %578 = vmatpush1.msra.mxu0 0.0
  %579 = vmatprep.subr.mxu0 0.0
  %580 = vmatpush1.msra.mxu0 0.0
  %581 = vmatprep.subr.mxu0 0.0
  %582 = vmatpush1.msra.mxu0 0.0
  %583 = vmatprep.subr.mxu0 0.0
  %584 = vmatpush1.msra.mxu0 0.0
  %585 = vmatprep.subr.mxu0 0.0
  %586 = vmatpush1.msra.mxu0 0.0
  %587 = vmatprep.subr.mxu0 0.0
  %588 = vmatpush1.msra.mxu0 0.0
  %589 = vmatprep.subr.mxu0 0.0
  %590 = vmatpush1.msra.mxu0 0.0
  %591 = vmatprep.subr.mxu0 0.0
  %592 = vmatpush1.msra.mxu0 0.0
  %593 = vmatprep.subr.mxu0 0.0
  %594 = vmatpush1.msra.mxu0 0.0
  %595 = vmatprep.mubr.f32.mxu0 0.0
  %596 = vmatmul.mubr.f32.gmra.mrb[0].mxu0 %v529
  %v597 = vpop.f32.mrb[0].mxu0
  %v598 = vadd.f32 0.0, %v597
  %v599 = vpop.f32.mrb[0].mxu0
  %600 = vdwg.mxu0
  %v601 = vadd.f32 %v525, %v598
  %v602 = vxor.u32 %v601, 2147483648
  %v603 = vmul.f32 %v602, 1.442695
  %v604 = vpow.pop %v603
  %v605 = vadd.f32 %v604, 1.0
  %v606 = vrcp.pop %v605
  %v607 = vmul.f32 1.0, %v606
  %v608 = vmul.f32 %v607, 2.0
  %v609 = vsub.f32 %v608, 1.0
  %v610 = vmul.f32 %v607, %v518
  %612 = vrot.lane.b32.xlu0 %v609, 64
  %v613 = vpop.permute.xlu0 %612
  %v615 = vmul.f32 %v607, %v613
  %617 = vrot.lane.b32.xlu0 %v615, 32
  %v618 = vpop.permute.xlu0 %617
  %v620 = vadd.f32 %v610, %v618
  %v621 = vtanh.pop %v620
  %623 = vrot.lane.b32.xlu0 %v621, 64
  %v624 = vpop.permute.xlu0 %623
  %v626 = vmul.f32 %v607, %v624
  %v627 = vld [vmem:[%s0 + $0x38] sm:$0xff]
  %629 = vrot.lane.b32.xlu0 %v626, 32
  %v630 = vpop.permute.xlu0 %629
  %v631 = vsel %vm17, %v630, 0
  %633 = vmatprep.subr.mxu0 0.0
  %634 = vmatpush1.msra.mxu0 %v11
  %635 = vmatprep.subr.mxu0 0.0
  %636 = vmatpush1.msra.mxu0 %v12
  %637 = vmatprep.subr.mxu0 0.0
  %638 = vmatpush1.msra.mxu0 %v13
  %639 = vmatprep.subr.mxu0 0.0
  %640 = vmatpush1.msra.mxu0 %v14
  %641 = vmatprep.subr.mxu0 0.0
  %642 = vmatpush1.msra.mxu0 0.0
  %643 = vmatprep.subr.mxu0 0.0
  %644 = vmatpush1.msra.mxu0 0.0
  %645 = vmatprep.subr.mxu0 0.0
  %646 = vmatpush1.msra.mxu0 0.0
  %647 = vmatprep.subr.mxu0 0.0
  %648 = vmatpush1.msra.mxu0 0.0
  %649 = vmatprep.subr.mxu0 0.0
  %650 = vmatpush1.msra.mxu0 0.0
  %651 = vmatprep.subr.mxu0 0.0
  %652 = vmatpush1.msra.mxu0 0.0
  %653 = vmatprep.subr.mxu0 0.0
  %654 = vmatpush1.msra.mxu0 0.0
  %655 = vmatprep.subr.mxu0 0.0
  %656 = vmatpush1.msra.mxu0 0.0
  %657 = vmatprep.subr.mxu0 0.0
  %658 = vmatpush1.msra.mxu0 0.0
  %659 = vmatprep.subr.mxu0 0.0
  %660 = vmatpush1.msra.mxu0 0.0
  %661 = vmatprep.subr.mxu0 0.0
  %662 = vmatpush1.msra.mxu0 0.0
  %663 = vmatprep.subr.mxu0 0.0
  %664 = vmatpush1.msra.mxu0 0.0
  %665 = vmatprep.subr.mxu0 0.0
  %666 = vmatpush1.msra.mxu0 0.0
  %667 = vmatprep.subr.mxu0 0.0
  %668 = vmatpush1.msra.mxu0 0.0
  %669 = vmatprep.subr.mxu0 0.0
  %670 = vmatpush1.msra.mxu0 0.0
  %671 = vmatprep.subr.mxu0 0.0
  %672 = vmatpush1.msra.mxu0 0.0
  %673 = vmatprep.subr.mxu0 0.0
  %674 = vmatpush1.msra.mxu0 0.0
  %675 = vmatprep.subr.mxu0 0.0
  %676 = vmatpush1.msra.mxu0 0.0
  %677 = vmatprep.subr.mxu0 0.0
  %678 = vmatpush1.msra.mxu0 0.0
  %679 = vmatprep.subr.mxu0 0.0
  %680 = vmatpush1.msra.mxu0 0.0
  %681 = vmatprep.subr.mxu0 0.0
  %682 = vmatpush1.msra.mxu0 0.0
  %683 = vmatprep.subr.mxu0 0.0
  %684 = vmatpush1.msra.mxu0 0.0
  %685 = vmatprep.subr.mxu0 0.0
  %686 = vmatpush1.msra.mxu0 0.0
  %687 = vmatprep.subr.mxu0 0.0
  %688 = vmatpush1.msra.mxu0 0.0
  %689 = vmatprep.subr.mxu0 0.0
  %690 = vmatpush1.msra.mxu0 0.0
  %691 = vmatprep.subr.mxu0 0.0
  %692 = vmatpush1.msra.mxu0 0.0
  %693 = vmatprep.subr.mxu0 0.0
  %694 = vmatpush1.msra.mxu0 0.0
  %695 = vmatprep.subr.mxu0 0.0
  %696 = vmatpush1.msra.mxu0 0.0
  %697 = vmatprep.mubr.f32.mxu0 0.0
  %698 = vmatmul.mubr.f32.gmra.mrb[0].mxu0 %v631
  %v699 = vpop.f32.mrb[0].mxu0
  %v700 = vadd.f32 0.0, %v699
  %v701 = vpop.f32.mrb[0].mxu0
  %702 = vdwg.mxu0
  %v703 = vadd.f32 %v627, %v700
  %v704 = vxor.u32 %v703, 2147483648
  %v705 = vmul.f32 %v704, 1.442695
  %v706 = vpow.pop %v705
  %v707 = vadd.f32 %v706, 1.0
  %v708 = vrcp.pop %v707
  %v709 = vmul.f32 1.0, %v708
  %v710 = vmul.f32 %v709, 2.0
  %v711 = vsub.f32 %v710, 1.0
  %v712 = vmul.f32 %v709, %v620
  %714 = vrot.lane.b32.xlu0 %v711, 64
  %v715 = vpop.permute.xlu0 %714
  %v717 = vmul.f32 %v709, %v715
  %719 = vrot.lane.b32.xlu0 %v717, 32
  %v720 = vpop.permute.xlu0 %719
  %v722 = vadd.f32 %v712, %v720
  %v723 = vtanh.pop %v722
  %725 = vrot.lane.b32.xlu0 %v723, 64
  %v726 = vpop.permute.xlu0 %725
  %v728 = vmul.f32 %v709, %v726
  %v729 = vld [vmem:[%s0 + $0x40] sm:$0xff]
  %731 = vrot.lane.b32.xlu0 %v728, 32
  %v732 = vpop.permute.xlu0 %731
  %v733 = vsel %vm17, %v732, 0
  %735 = vmatprep.subr.mxu0 0.0
  %736 = vmatpush1.msra.mxu0 %v11
  %737 = vmatprep.subr.mxu0 0.0
  %738 = vmatpush1.msra.mxu0 %v12
  %739 = vmatprep.subr.mxu0 0.0
  %740 = vmatpush1.msra.mxu0 %v13
  %741 = vmatprep.subr.mxu0 0.0
  %742 = vmatpush1.msra.mxu0 %v14
  %743 = vmatprep.subr.mxu0 0.0
  %744 = vmatpush1.msra.mxu0 0.0
  %745 = vmatprep.subr.mxu0 0.0
  %746 = vmatpush1.msra.mxu0 0.0
  %747 = vmatprep.subr.mxu0 0.0
  %748 = vmatpush1.msra.mxu0 0.0
  %749 = vmatprep.subr.mxu0 0.0
  %750 = vmatpush1.msra.mxu0 0.0
  %751 = vmatprep.subr.mxu0 0.0
  %752 = vmatpush1.msra.mxu0 0.0
  %753 = vmatprep.subr.mxu0 0.0
  %754 = vmatpush1.msra.mxu0 0.0
  %755 = vmatprep.subr.mxu0 0.0
  %756 = vmatpush1.msra.mxu0 0.0
  %757 = vmatprep.subr.mxu0 0.0
  %758 = vmatpush1.msra.mxu0 0.0
  %759 = vmatprep.subr.mxu0 0.0
  %760 = vmatpush1.msra.mxu0 0.0
  %761 = vmatprep.subr.mxu0 0.0
  %762 = vmatpush1.msra.mxu0 0.0
  %763 = vmatprep.subr.mxu0 0.0
  %764 = vmatpush1.msra.mxu0 0.0
  %765 = vmatprep.subr.mxu0 0.0
  %766 = vmatpush1.msra.mxu0 0.0
  %767 = vmatprep.subr.mxu0 0.0
  %768 = vmatpush1.msra.mxu0 0.0
  %769 = vmatprep.subr.mxu0 0.0
  %770 = vmatpush1.msra.mxu0 0.0
  %771 = vmatprep.subr.mxu0 0.0
  %772 = vmatpush1.msra.mxu0 0.0
  %773 = vmatprep.subr.mxu0 0.0
  %774 = vmatpush1.msra.mxu0 0.0
  %775 = vmatprep.subr.mxu0 0.0
  %776 = vmatpush1.msra.mxu0 0.0
  %777 = vmatprep.subr.mxu0 0.0
  %778 = vmatpush1.msra.mxu0 0.0
  %779 = vmatprep.subr.mxu0 0.0
  %780 = vmatpush1.msra.mxu0 0.0
  %781 = vmatprep.subr.mxu0 0.0
  %782 = vmatpush1.msra.mxu0 0.0
  %783 = vmatprep.subr.mxu0 0.0
  %784 = vmatpush1.msra.mxu0 0.0
  %785 = vmatprep.subr.mxu0 0.0
  %786 = vmatpush1.msra.mxu0 0.0
  %787 = vmatprep.subr.mxu0 0.0
  %788 = vmatpush1.msra.mxu0 0.0
  %789 = vmatprep.subr.mxu0 0.0
  %790 = vmatpush1.msra.mxu0 0.0
  %791 = vmatprep.subr.mxu0 0.0
  %792 = vmatpush1.msra.mxu0 0.0
  %793 = vmatprep.subr.mxu0 0.0
  %794 = vmatpush1.msra.mxu0 0.0
  %795 = vmatprep.subr.mxu0 0.0
  %796 = vmatpush1.msra.mxu0 0.0
  %797 = vmatprep.subr.mxu0 0.0
  %798 = vmatpush1.msra.mxu0 0.0
  %799 = vmatprep.mubr.f32.mxu0 0.0
  %800 = vmatmul.mubr.f32.gmra.mrb[0].mxu0 %v733
  %v801 = vpop.f32.mrb[0].mxu0
  %v802 = vadd.f32 0.0, %v801
  %v803 = vpop.f32.mrb[0].mxu0
  %804 = vdwg.mxu0
  %v805 = vadd.f32 %v729, %v802
  %v806 = vxor.u32 %v805, 2147483648
  %v807 = vmul.f32 %v806, 1.442695
  %v808 = vpow.pop %v807
  %v809 = vadd.f32 %v808, 1.0
  %v810 = vrcp.pop %v809
  %v811 = vmul.f32 1.0, %v810
  %v812 = vmul.f32 %v811, 2.0
  %v813 = vsub.f32 %v812, 1.0
  %v814 = vmul.f32 %v811, %v722
  %816 = vrot.lane.b32.xlu0 %v813, 64
  %v817 = vpop.permute.xlu0 %816
  %v819 = vmul.f32 %v811, %v817
  %821 = vrot.lane.b32.xlu0 %v819, 32
  %v822 = vpop.permute.xlu0 %821
  %v824 = vadd.f32 %v814, %v822
  %v825 = vtanh.pop %v824
  %827 = vrot.lane.b32.xlu0 %v825, 64
  %v828 = vpop.permute.xlu0 %827
  %v830 = vmul.f32 %v811, %v828
  %v831 = vld [vmem:[%s1 + $0x20] sm:$0x1]
  %v832 = vld [vmem:[%s1 + $0x21] sm:$0x1]
  %v833 = vlaneseq
  %v834 = vshrl.u32 %v833, 7
  %v835 = vsub.s32 0, %v834
  %v836 = vrot.slane %v831, %v835
  %838 = vrot.lane.b32.xlu0 %v836, 96
  %v839 = vpop.permute.xlu0 %838
  %v841 = vmul.f32 %v830, %v839
  %843 = vrot.lane.b32.xlu0 %v841, 32
  %v844 = vpop.permute.xlu0 %843
  %v846 = vsel %vm17, %v844, 0.0
  %847 = vadd.xlane.f32.xlu0 %v846
  %v848 = vpop.xlane.xlu0 %847
  %v849 = vlaneseq
  %v850 = vshrl.u32 %v849, 7
  %v851 = vsub.s32 0, %v850
  %v852 = vrot.slane %v832, %v851
  %v853 = vadd.f32 %v848, %v852
  %855 = vrot.lane.b32.xlu0 %v830, 32
  %v856 = vpop.permute.xlu0 %855
  %859 = vrot.lane.b32.xlu0 %v853, 64
  %v860 = vpop.permute.xlu0 %859
  %v862 = vsel %vm17, %v856, %v824
  %vm863 = vcmask 523264
  %v864 = vsel %vm863, %v862, %v860
  %vm865 = vcmask 531456
  %v866 = vsel %vm865, %v864, 0.0
  %867 = vst [vmem:[%s2] sm:$0xff] %v866
  // Predicated region
  $region10: #{a_call__.1} parent=0 // pred_check
    _
  $region11: #{a_call__.1} parent=0 // pred_check_branch
    %869 = sbr.rel (0) target = $region13
  $region12: #{a_call__.1} parent=0 // pred_region
    _
  $region13: #{a_call__.1} parent=0 // pred_fallthru
    _
  // Predicated region
  $region14: #{a_call__.1} parent=0 // pred_check
    _
  $region15: #{a_call__.1} parent=0 // pred_check_branch
    %871 = sbr.rel (0) target = $region17
  $region16: #{a_call__.1} parent=0 // pred_region
    _
  $region17: #{a_call__.1} parent=0 // pred_fallthru
    _

</llo_original>
